<compile_context>
chip_gen: v7x
topology: tpu7x:2x2x1
jax: 0.10.0
libtpu: 0.0.40
codegen_flags: <defaults>
</compile_context>

<pallas_src>
import jax
import jax.numpy as jnp
from jax.experimental import pallas as pl
from jax.experimental.pallas import tpu as pltpu

V = 256        # vocab size (lane-aligned)
H = 128        # hidden size (lane-aligned)
ROW_TILE = 256 # token rows per grid step (>=256 keeps the 256x256 MXU busy on v6e/v7x)


def _round_up(x, m):
    return ((x + m - 1) // m) * m


# ---------------- fused LM-head + shift + masked cross-entropy kernel ----------------

def _fused_lmhead_ce_kernel(lab_ref, h_ref, w_ref, loss_ref, cnt_ref):
    """Per row-tile:
       MXU matmul (bf16 in, f32 acc) against the tied embedding,
       log-softmax over the vocab, one-hot label gather,
       masked NLL / count accumulation into resident column accumulators.

    lab_ref : (N_pad, 1) int32, resident in VMEM for the whole grid
    h_ref   : (TM, H)    bf16 decoder hidden tile
    w_ref   : (V, H)     bf16 tied embedding / LM head, resident
    loss_ref, cnt_ref : (TM, 1) f32 accumulators, resident across the grid
    """
    i = pl.program_id(0)
    tm = h_ref.shape[0]

    @pl.when(i == 0)
    def _():
        loss_ref[...] = jnp.zeros_like(loss_ref)
        cnt_ref[...] = jnp.zeros_like(cnt_ref)

    # logits = hidden @ emb^T : contract the hidden dim of both operands so the
    # tied weight is consumed as stored -- no E.T copy in HBM, no in-kernel
    # transpose.  bf16 operands, f32 accumulation; logits stay in VMEM only.
    logits = jax.lax.dot_general(
        h_ref[...], w_ref[...],
        dimension_numbers=(((1,), (1,)), ((), ())),
        preferred_element_type=jnp.float32)              # (TM, V) f32

    start = pl.multiple_of(i * tm, tm)
    labels = lab_ref[pl.ds(start, tm), :]                # (TM, 1) int32

    # CE math stays in f32 (v5e has no bf16 VPU/EUP path).
    m = jnp.max(logits, axis=-1, keepdims=True)
    lse = jnp.log(jnp.sum(jnp.exp(logits - m), axis=-1, keepdims=True)) + m

    col = jax.lax.broadcasted_iota(jnp.int32, logits.shape, 1)
    lab_logit = jnp.sum(jnp.where(col == labels, logits, 0.0),
                        axis=-1, keepdims=True)          # (TM, 1)

    # active = label != 0 (matches target_ids.ne(0); class id 0 == pad is always
    # ignored, as in the PyTorch active_loss mask) and != -1 (ignore_index).
    active = jnp.logical_and(labels != 0, labels != -1)

    # Vector adds into resident column accumulators -- no scalar/(1,1) masked
    # stores in the loop.  Final cross-lane reduce + divide happens in the wrapper.
    loss_ref[...] += jnp.where(active, lse - lab_logit, 0.0)
    cnt_ref[...] += active.astype(jnp.float32)


def fused_lmhead_masked_ce(labels, hidden, emb, tm):
    n_pad, hd = hidden.shape
    v = emb.shape[0]
    n_tiles = n_pad // tm
    # TODO(synk): for real vocab sizes, tile the vocab axis with an online
    # (running-max) logsumexp and budget blocks for v7x's 64 MiB VMEM; at V=256
    # the full vocab fits trivially per tile on every generation.
    return pl.pallas_call(
        _fused_lmhead_ce_kernel,
        out_shape=(jax.ShapeDtypeStruct((tm, 1), jnp.float32),
                   jax.ShapeDtypeStruct((tm, 1), jnp.float32)),
        grid_spec=pltpu.PrefetchScalarGridSpec(
            num_scalar_prefetch=0,
            grid=(n_tiles,),
            in_specs=[pl.BlockSpec((n_pad, 1), lambda i: (0, 0)),   # labels: one DMA, resident
                      pl.BlockSpec((tm, hd), lambda i: (i, 0)),     # hidden tile (pipelined)
                      pl.BlockSpec((v, hd), lambda i: (0, 0))],     # tied weight, resident
            out_specs=[pl.BlockSpec((tm, 1), lambda i: (0, 0)),
                       pl.BlockSpec((tm, 1), lambda i: (0, 0))]),
        compiler_params=pltpu.CompilerParams(
            # accumulator outputs are revisited every step -> reduction axis.
            # TODO(synk): on v7x, a leading size-2 "parallel" axis with per-core
            # partial accumulators would use both TensorCores.
            dimension_semantics=("arbitrary",)),
    )(labels, hidden, emb)


# ---------------- Seq2Seq forward (training path) ----------------

def seq2seq_forward(params, source_ids, target_ids):
    E = params["emb"]                                      # (V, H), tied embeddings

    # Minimal deterministic encoder/decoder stand-in (plain-JAX glue):
    src_mask = (source_ids != 0).astype(jnp.float32)       # attention_mask = ne(0)
    enc = E[source_ids]                                    # (B, S, H)
    ctx = jnp.sum(enc * src_mask[..., None], axis=1) / jnp.maximum(
        jnp.sum(src_mask, axis=1, keepdims=True), 1.0)     # (B, H)

    # Only the first T-1 decoder positions feed the loss (logits[:, :-1]), so
    # never compute the final position's hidden state / logits.
    dec = E[target_ids[:, :-1]] + ctx[:, None, :]          # (B, T-1, H)

    B, Tm1, Hd = dec.shape
    N = B * Tm1
    hidden = dec.reshape(N, Hd).astype(jnp.bfloat16)       # bf16 MXU inputs, f32 acc
    labels = target_ids[:, 1:].reshape(N, 1).astype(jnp.int32)

    tm = min(ROW_TILE, _round_up(N, 8))
    n_pad = _round_up(N, tm)
    pad = n_pad - N
    if pad:
        hidden = jnp.concatenate(
            [hidden, jnp.zeros((pad, Hd), hidden.dtype)], axis=0)
        labels = jnp.concatenate(
            [labels, jnp.zeros((pad, 1), labels.dtype)], axis=0)  # label 0 -> masked out

    loss_col, cnt_col = fused_lmhead_masked_ce(
        labels, hidden, E.astype(jnp.bfloat16), tm)

    loss_sum = jnp.sum(loss_col)
    cnt = jnp.sum(cnt_col)
    # Note: returns 0.0 when no positions are active (PyTorch CE would give NaN).
    return loss_sum / jnp.maximum(cnt, 1.0)


# TODO(synk): the beam-search inference branch (Beam class: data-dependent
# sequential decoding with host-side topk bookkeeping) has no clean Pallas
# equivalent and is not implemented here.

if __name__ == "__main__":
    key = jax.random.PRNGKey(0)
    k_emb, k_src, k_tgt = jax.random.split(key, 3)

    B, S, T = 2, 16, 8

    params = {"emb": 0.02 * jax.random.normal(k_emb, (V, H), jnp.float32)}

    source_ids = jax.random.randint(k_src, (B, S), 1, V, dtype=jnp.int32)
    source_ids = source_ids.at[:, -3:].set(0)              # some padding
    target_ids = jax.random.randint(k_tgt, (B, T), 1, V, dtype=jnp.int32)
    target_ids = target_ids.at[:, -2:].set(0)              # some padding

    loss = jax.jit(seq2seq_forward)(params, source_ids, target_ids)
    jax.block_until_ready(loss)
    assert loss.shape == () and bool(jnp.isfinite(loss))
    print("KERNEL_OK")
</pallas_src>

<mosaic_0001>
module attributes {stable_mosaic.version = 11 : i64} {
  func.func @_fused_lmhead_ce_kernel(%arg0: i32, %arg1: memref<16x1xi32, #tpu.memory_space<vmem>>, %arg2: memref<16x128xbf16, #tpu.memory_space<vmem>>, %arg3: memref<256x128xbf16, #tpu.memory_space<vmem>>, %arg4: memref<16x1xf32, #tpu.memory_space<vmem>>, %arg5: memref<16x1xf32, #tpu.memory_space<vmem>>) attributes {dimension_semantics = [#tpu.dimension_semantics<arbitrary>], iteration_bounds = array<i64: 1>, scalar_prefetch = 0 : i64, scratch_operands = 0 : i64, tpu.core_type = #tpu.core_type<tc>, window_params = [{pipeline_mode = #tpu.pipeline_mode<synchronous>, transform_indices = @transform_0, window_bounds = array<i64: 16, 1>}, {transform_indices = @transform_1, window_bounds = array<i64: 16, 128>}, {pipeline_mode = #tpu.pipeline_mode<synchronous>, transform_indices = @transform_2, window_bounds = array<i64: 256, 128>}, {pipeline_mode = #tpu.pipeline_mode<synchronous>, transform_indices = @transform_3, window_bounds = array<i64: 16, 1>}, {pipeline_mode = #tpu.pipeline_mode<synchronous>, transform_indices = @transform_4, window_bounds = array<i64: 16, 1>}]} {
    %c0_i32 = arith.constant 0 : i32
    %0 = arith.cmpi eq, %arg0, %c0_i32 : i32
    %1 = arith.extui %0 : i1 to i32
    %c0_i32_0 = arith.constant 0 : i32
    %2 = arith.cmpi ne, %1, %c0_i32_0 : i32
    scf.if %2 {
      %cst_19 = arith.constant 0.000000e+00 : f32
      %42 = vector.broadcast %cst_19 : f32 to vector<16x1xf32>
      %c0_20 = arith.constant 0 : index
      %c0_21 = arith.constant 0 : index
      %43 = vector.load %arg4[%c0_20, %c0_21] : memref<16x1xf32, #tpu.memory_space<vmem>>, vector<16x1xf32>
      tpu.vector_store %arg4[%c0_20, %c0_21], %42 {strides = array<i32>} : memref<16x1xf32, #tpu.memory_space<vmem>>, vector<16x1xf32>,
      %cst_22 = arith.constant 0.000000e+00 : f32
      %44 = vector.broadcast %cst_22 : f32 to vector<16x1xf32>
      %c0_23 = arith.constant 0 : index
      %c0_24 = arith.constant 0 : index
      %45 = vector.load %arg5[%c0_23, %c0_24] : memref<16x1xf32, #tpu.memory_space<vmem>>, vector<16x1xf32>
      tpu.vector_store %arg5[%c0_23, %c0_24], %44 {strides = array<i32>} : memref<16x1xf32, #tpu.memory_space<vmem>>, vector<16x1xf32>,
    } else {
    }
    %c0 = arith.constant 0 : index
    %c0_1 = arith.constant 0 : index
    %3 = vector.load %arg2[%c0, %c0_1] : memref<16x128xbf16, #tpu.memory_space<vmem>>, vector<16x128xbf16>
    %c0_2 = arith.constant 0 : index
    %c0_3 = arith.constant 0 : index
    %4 = vector.load %arg3[%c0_2, %c0_3] : memref<256x128xbf16, #tpu.memory_space<vmem>>, vector<256x128xbf16>
    %cst = arith.constant dense<0.000000e+00> : vector<16x256xf32>
    %5 = tpu.matmul %3, %4, %cst {dimension_numbers = #tpu.dot_dimension_numbers<[1], [1], [0], [0], [0, 0, 1, 0], [], []>} : vector<16x128xbf16>, vector<256x128xbf16>, vector<16x256xf32> -> vector<16x256xf32>
    %c16_i32 = arith.constant 16 : i32
    %6 = arith.muli %arg0, %c16_i32 : i32
    %7 = tpu.assume_multiple %6, 16 : i32
    %8 = arith.index_cast %7 : i32 to index
    %c0_4 = arith.constant 0 : index
    %9 = vector.load %arg1[%8, %c0_4] : memref<16x1xi32, #tpu.memory_space<vmem>>, vector<16x1xi32>
    %cst_5 = arith.constant dense<0xFF800000> : vector<16xf32>
    %10 = vector.multi_reduction <maximumf>, %5, %cst_5 [1] : vector<16x256xf32> to vector<16xf32>
    %11 = vector.shape_cast %10 : vector<16xf32> to vector<16x1xf32>
    %12 = vector.broadcast %11 : vector<16x1xf32> to vector<16x256xf32>
    %13 = arith.subf %5, %12 : vector<16x256xf32>
    %14 = math.exp %13 : vector<16x256xf32>
    %cst_6 = arith.constant dense<0.000000e+00> : vector<16xf32>
    %15 = vector.multi_reduction <add>, %14, %cst_6 [1] : vector<16x256xf32> to vector<16xf32>
    %16 = vector.shape_cast %15 : vector<16xf32> to vector<16x1xf32>
    %17 = math.log %16 : vector<16x1xf32>
    %18 = arith.addf %17, %11 : vector<16x1xf32>
    %19 = tpu.iota {dimensions = array<i32: 1>} : vector<16x256xi32>
    %20 = vector.broadcast %9 : vector<16x1xi32> to vector<16x256xi32>
    %21 = arith.cmpi eq, %19, %20 : vector<16x256xi32>
    %cst_7 = arith.constant 0.000000e+00 : f32
    %22 = vector.broadcast %cst_7 : f32 to vector<16x256xf32>
    %23 = arith.select %21, %5, %22 : vector<16x256xi1>, vector<16x256xf32>
    %cst_8 = arith.constant dense<0.000000e+00> : vector<16xf32>
    %24 = vector.multi_reduction <add>, %23, %cst_8 [1] : vector<16x256xf32> to vector<16xf32>
    %25 = vector.shape_cast %24 : vector<16xf32> to vector<16x1xf32>
    %c0_i32_9 = arith.constant 0 : i32
    %26 = vector.broadcast %c0_i32_9 : i32 to vector<16x1xi32>
    %27 = arith.cmpi ne, %9, %26 : vector<16x1xi32>
    %c-1_i32 = arith.constant -1 : i32
    %28 = vector.broadcast %c-1_i32 : i32 to vector<16x1xi32>
    %29 = arith.cmpi ne, %9, %28 : vector<16x1xi32>
    %30 = arith.andi %27, %29 : vector<16x1xi1>
    %c0_10 = arith.constant 0 : index
    %c0_11 = arith.constant 0 : index
    %31 = vector.load %arg4[%c0_10, %c0_11] : memref<16x1xf32, #tpu.memory_space<vmem>>, vector<16x1xf32>
    %32 = arith.subf %18, %25 : vector<16x1xf32>
    %cst_12 = arith.constant 0.000000e+00 : f32
    %33 = vector.broadcast %cst_12 : f32 to vector<16x1xf32>
    %34 = arith.select %30, %32, %33 : vector<16x1xi1>, vector<16x1xf32>
    %35 = arith.addf %31, %34 : vector<16x1xf32>
    %c0_13 = arith.constant 0 : index
    %c0_14 = arith.constant 0 : index
    %36 = vector.load %arg4[%c0_13, %c0_14] : memref<16x1xf32, #tpu.memory_space<vmem>>, vector<16x1xf32>
    tpu.vector_store %arg4[%c0_13, %c0_14], %35 {strides = array<i32>} : memref<16x1xf32, #tpu.memory_space<vmem>>, vector<16x1xf32>,
    %c0_15 = arith.constant 0 : index
    %c0_16 = arith.constant 0 : index
    %37 = vector.load %arg5[%c0_15, %c0_16] : memref<16x1xf32, #tpu.memory_space<vmem>>, vector<16x1xf32>
    %38 = arith.extui %30 : vector<16x1xi1> to vector<16x1xi32>
    %39 = arith.sitofp %38 : vector<16x1xi32> to vector<16x1xf32>
    %40 = arith.addf %37, %39 : vector<16x1xf32>
    %c0_17 = arith.constant 0 : index
    %c0_18 = arith.constant 0 : index
    %41 = vector.load %arg5[%c0_17, %c0_18] : memref<16x1xf32, #tpu.memory_space<vmem>>, vector<16x1xf32>
    tpu.vector_store %arg5[%c0_17, %c0_18], %40 {strides = array<i32>} : memref<16x1xf32, #tpu.memory_space<vmem>>, vector<16x1xf32>,
    return
  }
  func.func @transform_0(%arg0: i32) -> (i32, i32) {
    %c0_i32 = arith.constant 0 : i32
    %c0_i32_0 = arith.constant 0 : i32
    %c0_i32_1 = arith.constant 0 : i32
    return %c0_i32, %c0_i32_0 : i32, i32
  }
  func.func @transform_1(%arg0: i32) -> (i32, i32) {
    %c0_i32 = arith.constant 0 : i32
    %c0_i32_0 = arith.constant 0 : i32
    return %arg0, %c0_i32 : i32, i32
  }
  func.func @transform_2(%arg0: i32) -> (i32, i32) {
    %c0_i32 = arith.constant 0 : i32
    %c0_i32_0 = arith.constant 0 : i32
    %c0_i32_1 = arith.constant 0 : i32
    return %c0_i32, %c0_i32_0 : i32, i32
  }
  func.func @transform_3(%arg0: i32) -> (i32, i32) {
    %c0_i32 = arith.constant 0 : i32
    %c0_i32_0 = arith.constant 0 : i32
    %c0_i32_1 = arith.constant 0 : i32
    return %c0_i32, %c0_i32_0 : i32, i32
  }
  func.func @transform_4(%arg0: i32) -> (i32, i32) {
    %c0_i32 = arith.constant 0 : i32
    %c0_i32_0 = arith.constant 0 : i32
    %c0_i32_1 = arith.constant 0 : i32
    return %c0_i32, %c0_i32_0 : i32, i32
  }
}

</mosaic_0001>

<llo_original>
// kernel: seq2seq_forward.1
$region0: #{seq2seq_forward.1}
  #allocation0 [shape = 'u32[]', space=smem, size = 0x4, offset = 0x4, fixed_abs, tag = 'smem constant byte address 0x4 - core index']
  #allocation1 [shape = 'u32[144,128]{1,0:T(1,128)}', space=vmem, size = 0x12000, scoped, tag = 'internal scratch']
  %s0 = inlined_call_operand.vmem [shape: s32[16,1], index: 0, kind: input, shape index: {}]
  %s1 = inlined_call_operand.vmem [shape: bf16[16,128], index: 1, kind: input, shape index: {}]
  %s2 = inlined_call_operand.vmem [shape: bf16[256,128], index: 2, kind: input, shape index: {}]
  %s3 = inlined_call_operand.vmem [shape: f32[16,1], index: 3, kind: output, shape index: {0}]
  %s4 = inlined_call_operand.vmem [shape: f32[16,1], index: 4, kind: output, shape index: {1}]
  %5 = xla_tuple %s3, %s4
  %s6 = sld [smem:[#allocation0]]
  $region34: #{seq2seq_forward.1} parent=0
    _
  %s8 = ssub.s32 1, %s6
  %s9 = scalar_select 0, %s8, %s6
  // Predicated region
  $region2: #{seq2seq_forward.1} parent=0 // pred_check
    _
  $region3: #{seq2seq_forward.1} parent=0 // pred_check_branch
    %11 = sbr.rel (0) target = $region5
  $region4: #{seq2seq_forward.1} parent=0 // pred_region
    _
  $region5: #{seq2seq_forward.1} parent=0 // pred_fallthru
    _
  // Predicated region
  $region6: #{seq2seq_forward.1} parent=0 // pred_check
    _
  $region7: #{seq2seq_forward.1} parent=0 // pred_check_branch
    %13 = sbr.rel (0) target = $region9
  $region8: #{seq2seq_forward.1} parent=0 // pred_region
    _
  $region9: #{seq2seq_forward.1} parent=0 // pred_fallthru
    _
  // Predicated region
  $region10: #{seq2seq_forward.1} parent=0 // pred_check
    _
  $region11: #{seq2seq_forward.1} parent=0 // pred_check_branch
    %15 = sbr.rel (0) target = $region13
  $region12: #{seq2seq_forward.1} parent=0 // pred_region
    _
  $region13: #{seq2seq_forward.1} parent=0 // pred_fallthru
    _
  %p17 = scmp.eq.s32.totalorder 0, 0
  // Predicated region
  $region14: #{seq2seq_forward.1} parent=0 // pred_check
    %p18 = pneg %p17
  $region15: #{seq2seq_forward.1} parent=0 // pred_check_branch
    %20 = sbr.rel (%p18) target = $region17
  $region16: #{seq2seq_forward.1} parent=0 // pred_region
    %vm21 = vcmask 7168
    %22 = vst.msk [vmem:[%s3] sm:$0xff] %vm21, 0.0
    %23 = vst.msk [vmem:[%s3 + $0x8] sm:$0xff] %vm21, 0.0
    %24 = vst.msk [vmem:[%s4] sm:$0xff] %vm21, 0.0
    %25 = vst.msk [vmem:[%s4 + $0x8] sm:$0xff] %vm21, 0.0
  $region17: #{seq2seq_forward.1} parent=0 // pred_fallthru
    _
  %v26 = vld [vmem:[%s1] sm:$0xf]
  %v27 = vld [vmem:[%s1 + $0x4] sm:$0xf]
  %v28 = vld [vmem:[%s2] sm:$0xf]
  %v29 = vld [vmem:[%s2 + $0x4] sm:$0xf]
  %v30 = vld [vmem:[%s2 + $0x8] sm:$0xf]
  %v31 = vld [vmem:[%s2 + $0xc] sm:$0xf]
  %v32 = vld [vmem:[%s2 + $0x10] sm:$0xf]
  %v33 = vld [vmem:[%s2 + $0x14] sm:$0xf]
  %v34 = vld [vmem:[%s2 + $0x18] sm:$0xf]
  %v35 = vld [vmem:[%s2 + $0x1c] sm:$0xf]
  %v36 = vld [vmem:[%s2 + $0x20] sm:$0xf]
  %v37 = vld [vmem:[%s2 + $0x24] sm:$0xf]
  %v38 = vld [vmem:[%s2 + $0x28] sm:$0xf]
  %v39 = vld [vmem:[%s2 + $0x2c] sm:$0xf]
  %v40 = vld [vmem:[%s2 + $0x30] sm:$0xf]
  %v41 = vld [vmem:[%s2 + $0x34] sm:$0xf]
  %v42 = vld [vmem:[%s2 + $0x38] sm:$0xf]
  %v43 = vld [vmem:[%s2 + $0x3c] sm:$0xf]
  %v44 = vld [vmem:[%s2 + $0x40] sm:$0xf]
  %v45 = vld [vmem:[%s2 + $0x44] sm:$0xf]
  %v46 = vld [vmem:[%s2 + $0x48] sm:$0xf]
  %v47 = vld [vmem:[%s2 + $0x4c] sm:$0xf]
  %v48 = vld [vmem:[%s2 + $0x50] sm:$0xf]
  %v49 = vld [vmem:[%s2 + $0x54] sm:$0xf]
  %v50 = vld [vmem:[%s2 + $0x58] sm:$0xf]
  %v51 = vld [vmem:[%s2 + $0x5c] sm:$0xf]
  %v52 = vld [vmem:[%s2 + $0x60] sm:$0xf]
  %v53 = vld [vmem:[%s2 + $0x64] sm:$0xf]
  %v54 = vld [vmem:[%s2 + $0x68] sm:$0xf]
  %v55 = vld [vmem:[%s2 + $0x6c] sm:$0xf]
  %v56 = vld [vmem:[%s2 + $0x70] sm:$0xf]
  %v57 = vld [vmem:[%s2 + $0x74] sm:$0xf]
  %v58 = vld [vmem:[%s2 + $0x78] sm:$0xf]
  %v59 = vld [vmem:[%s2 + $0x7c] sm:$0xf]
  %v62 = vunpack.c.l.b16 %v26
  %v63 = vunpack.c.l.b16 %v27
  %v64 = vpack.c.b16 %v63, %v62
  %v98 = vunpack.c.l.b16 %v28
  %v99 = vunpack.c.l.b16 %v29
  %v100 = vunpack.c.l.b16 %v30
  %v101 = vunpack.c.l.b16 %v31
  %v102 = vunpack.c.l.b16 %v32
  %v103 = vunpack.c.l.b16 %v33
  %v104 = vunpack.c.l.b16 %v34
  %v105 = vunpack.c.l.b16 %v35
  %v106 = vunpack.c.l.b16 %v36
  %v107 = vunpack.c.l.b16 %v37
  %v108 = vunpack.c.l.b16 %v38
  %v109 = vunpack.c.l.b16 %v39
  %v110 = vunpack.c.l.b16 %v40
  %v111 = vunpack.c.l.b16 %v41
  %v112 = vunpack.c.l.b16 %v42
  %v113 = vunpack.c.l.b16 %v43
  %v114 = vunpack.c.l.b16 %v44
  %v115 = vunpack.c.l.b16 %v45
  %v116 = vunpack.c.l.b16 %v46
  %v117 = vunpack.c.l.b16 %v47
  %v118 = vunpack.c.l.b16 %v48
  %v119 = vunpack.c.l.b16 %v49
  %v120 = vunpack.c.l.b16 %v50
  %v121 = vunpack.c.l.b16 %v51
  %v122 = vunpack.c.l.b16 %v52
  %v123 = vunpack.c.l.b16 %v53
  %v124 = vunpack.c.l.b16 %v54
  %v125 = vunpack.c.l.b16 %v55
  %v126 = vunpack.c.l.b16 %v56
  %v127 = vunpack.c.l.b16 %v57
  %v128 = vunpack.c.l.b16 %v58
  %v129 = vunpack.c.l.b16 %v59
  %v130 = vpack.c.b16 %v99, %v98
  %v131 = vpack.c.b16 %v101, %v100
  %v132 = vpack.c.b16 %v103, %v102
  %v133 = vpack.c.b16 %v105, %v104
  %v134 = vpack.c.b16 %v107, %v106
  %v135 = vpack.c.b16 %v109, %v108
  %v136 = vpack.c.b16 %v111, %v110
  %v137 = vpack.c.b16 %v113, %v112
  %v138 = vpack.c.b16 %v115, %v114
  %v139 = vpack.c.b16 %v117, %v116
  %v140 = vpack.c.b16 %v119, %v118
  %v141 = vpack.c.b16 %v121, %v120
  %v142 = vpack.c.b16 %v123, %v122
  %v143 = vpack.c.b16 %v125, %v124
  %v144 = vpack.c.b16 %v127, %v126
  %v145 = vpack.c.b16 %v129, %v128
  %162 = vmatprep.subr.bf16.mxu0 0
  %163 = vmatpush1.bf16.xpose.msra.mxu0 %v130
  %164 = vmatprep.subr.bf16.mxu0 0
  %165 = vmatpush1.bf16.xpose.msra.mxu0 %v131
  %166 = vmatprep.subr.bf16.mxu0 0
  %167 = vmatpush1.bf16.xpose.msra.mxu0 %v132
  %168 = vmatprep.subr.bf16.mxu0 0
  %169 = vmatpush1.bf16.xpose.msra.mxu0 %v133
  %170 = vmatprep.subr.bf16.mxu0 0
  %171 = vmatpush1.bf16.xpose.msra.mxu0 %v134
  %172 = vmatprep.subr.bf16.mxu0 0
  %173 = vmatpush1.bf16.xpose.msra.mxu0 %v135
  %174 = vmatprep.subr.bf16.mxu0 0
  %175 = vmatpush1.bf16.xpose.msra.mxu0 %v136
  %176 = vmatprep.subr.bf16.mxu0 0
  %177 = vmatpush1.bf16.xpose.msra.mxu0 %v137
  %178 = vmatprep.subr.bf16.mxu0 0
  %179 = vmatpush1.bf16.xpose.msra.mxu0 %v138
  %180 = vmatprep.subr.bf16.mxu0 0
  %181 = vmatpush1.bf16.xpose.msra.mxu0 %v139
  %182 = vmatprep.subr.bf16.mxu0 0
  %183 = vmatpush1.bf16.xpose.msra.mxu0 %v140
  %184 = vmatprep.subr.bf16.mxu0 0
  %185 = vmatpush1.bf16.xpose.msra.mxu0 %v141
  %186 = vmatprep.subr.bf16.mxu0 0
  %187 = vmatpush1.bf16.xpose.msra.mxu0 %v142
  %188 = vmatprep.subr.bf16.mxu0 0
  %189 = vmatpush1.bf16.xpose.msra.mxu0 %v143
  %190 = vmatprep.subr.bf16.mxu0 0
  %191 = vmatpush1.bf16.xpose.msra.mxu0 %v144
  %192 = vmatprep.subr.bf16.mxu0 0
  %193 = vmatpush1.bf16.xpose.msra.mxu0 %v145
  %194 = vmatprep.mubr.bf16.mxu0 0
  %195 = vmatmul.mubr.bf16.gmra.mrb[0].mxu0 %v64
  %v196 = vpop.f32.mrb[0].mxu0
  %v197 = vadd.f32 0.0, %v196
  %v198 = vpop.f32.mrb[0].mxu0
  %v199 = vadd.f32 0.0, %v198
  %v200 = vpop.f32.mrb[0].mxu0
  %v201 = vadd.f32 0.0, %v200
  %v202 = vpop.f32.mrb[0].mxu0
  %v203 = vadd.f32 0.0, %v202
  %204 = vdwg.mxu0
  %s205 = smul.u32 0, 16
  %s206 = scalar_lea.vmem %s0, %s205
  %v207 = vld [vmem:[%s206] sm:$0xff]
  %v208 = vld [vmem:[%s206 + $0x8] sm:$0xff]
  %v209 = vmax.f32 %v197, %v199
  %210 = vmax.xlane.f32.xlu0 %v209
  %v211 = vpop.xlane.xlu0 %210
  %v212 = vmax.f32 %v201, %v203
  %213 = vmax.xlane.f32.xlu0 %v212
  %v214 = vpop.xlane.xlu0 %213
  %v215 = vsub.f32 %v197, %v211
  %v216 = vsub.f32 %v199, %v211
  %v217 = vsub.f32 %v201, %v214
  %v218 = vsub.f32 %v203, %v214
  %v219 = vmul.f32 %v215, 1.442695
  %v220 = vpow.pop %v219
  %v221 = vmul.f32 %v216, 1.442695
  %v222 = vpow.pop %v221
  %v223 = vmul.f32 %v217, 1.442695
  %v224 = vpow.pop %v223
  %v225 = vmul.f32 %v218, 1.442695
  %v226 = vpow.pop %v225
  %v227 = vadd.f32 %v220, %v222
  %228 = vadd.xlane.f32.xlu0 %v227
  %v229 = vpop.xlane.xlu0 %228
  %v230 = vadd.f32 %v224, %v226
  %231 = vadd.xlane.f32.xlu0 %v230
  %v232 = vpop.xlane.xlu0 %231
  %v233 = vlog2.pop %v229
  %v234 = vmul.f32 %v233, 0.6931472
  %v235 = vlog2.pop %v232
  %v236 = vmul.f32 %v235, 0.6931472
  %v237 = vadd.f32 %v234, %v211
  %v238 = vadd.f32 %v236, %v214
  %v239 = vlaneseq
  %v240 = vand.u32 %v239, 127
  %v241 = vadd.s32 %v240, 128
  %242 = vset.pattern.permute.xlu0 0
  %243 = vperm.xlu0 %242, %v207
  %v244 = vpop.permute.xlu0 %243
  %245 = vset.pattern.permute.xlu0 0
  %246 = vperm.xlu0 %245, %v208
  %v247 = vpop.permute.xlu0 %246
  %vm248 = vcmp.eq.s32.totalorder %v240, %v244
  %vm249 = vcmp.eq.s32.totalorder %v241, %v244
  %vm250 = vcmp.eq.s32.totalorder %v240, %v247
  %vm251 = vcmp.eq.s32.totalorder %v241, %v247
  %v252 = vsel %vm248, %v197, 0.0
  %v253 = vsel %vm249, %v199, 0.0
  %v254 = vsel %vm250, %v201, 0.0
  %v255 = vsel %vm251, %v203, 0.0
  %v256 = vadd.f32 %v252, %v253
  %257 = vadd.xlane.f32.xlu0 %v256
  %v258 = vpop.xlane.xlu0 %257
  %v259 = vadd.f32 %v254, %v255
  %260 = vadd.xlane.f32.xlu0 %v259
  %v261 = vpop.xlane.xlu0 %260
  %vm262 = vcmp.ne.s32.totalorder %v207, 0
  %vm263 = vcmp.ne.s32.totalorder %v208, 0
  %vm264 = vcmp.ne.s32.totalorder %v207, 4294967295
  %vm265 = vcmp.ne.s32.totalorder %v208, 4294967295
  %vm266 = vmand %vm262, %vm264
  %vm267 = vmand %vm263, %vm265
  %v268 = vld [vmem:[%s3] sm:$0xff]
  %v269 = vld [vmem:[%s3 + $0x8] sm:$0xff]
  %v270 = vsub.f32 %v237, %v258
  %v271 = vsub.f32 %v238, %v261
  %v272 = vsel %vm266, %v270, 0.0
  %v273 = vsel %vm267, %v271, 0.0
  %v274 = vadd.f32 %v268, %v272
  %v275 = vadd.f32 %v269, %v273
  %vm276 = vcmask 7168
  %277 = vst.msk [vmem:[%s3] sm:$0xff] %vm276, %v274
  %278 = vst.msk [vmem:[%s3 + $0x8] sm:$0xff] %vm276, %v275
  %v279 = vld [vmem:[%s4] sm:$0xff]
  %v280 = vld [vmem:[%s4 + $0x8] sm:$0xff]
  %v281 = vsel %vm266, 1, 0
  %v282 = vsel %vm267, 1, 0
  %v283 = vcvt.s32.f32 %v281
  %v284 = vcvt.s32.f32 %v282
  %v285 = vadd.f32 %v279, %v283
  %v286 = vadd.f32 %v280, %v284
  %287 = vst.msk [vmem:[%s4] sm:$0xff] %vm276, %v285
  %288 = vst.msk [vmem:[%s4 + $0x8] sm:$0xff] %vm276, %v286
  // Predicated region
  $region18: #{seq2seq_forward.1} parent=0 // pred_check
    _
  $region19: #{seq2seq_forward.1} parent=0 // pred_check_branch
    %290 = sbr.rel (0) target = $region21
  $region20: #{seq2seq_forward.1} parent=0 // pred_region
    _
  $region21: #{seq2seq_forward.1} parent=0 // pred_fallthru
    _
  // Predicated region
  $region22: #{seq2seq_forward.1} parent=0 // pred_check
    _
  $region23: #{seq2seq_forward.1} parent=0 // pred_check_branch
    %292 = sbr.rel (0) target = $region25
  $region24: #{seq2seq_forward.1} parent=0 // pred_region
    _
  $region25: #{seq2seq_forward.1} parent=0 // pred_fallthru
    _
  // Predicated region
  $region26: #{seq2seq_forward.1} parent=0 // pred_check
    _
  $region27: #{seq2seq_forward.1} parent=0 // pred_check_branch
    %294 = sbr.rel (0) target = $region29
  $region28: #{seq2seq_forward.1} parent=0 // pred_region
    _
  $region29: #{seq2seq_forward.1} parent=0 // pred_fallthru
    _
  // Predicated region
  $region30: #{seq2seq_forward.1} parent=0 // pred_check
    _
  $region31: #{seq2seq_forward.1} parent=0 // pred_check_branch
    %296 = sbr.rel (0) target = $region33
  $region32: #{seq2seq_forward.1} parent=0 // pred_region
    _
  $region33: #{seq2seq_forward.1} parent=0 // pred_fallthru
    _

</llo_original>
